<compile_context>
chip_gen: v7x
topology: tpu7x:2x2x1
jax: 0.10.0
libtpu: 0.0.40
codegen_flags: <defaults>
</compile_context>

<pallas_src>
import functools
import numpy as np
import jax
import jax.numpy as jnp
from jax.experimental import pallas as pl
from jax.experimental.pallas import tpu as pltpu


# ----------------------------------------------------------------------------
# Pallas kernel
# ----------------------------------------------------------------------------
def _af_block_kernel(x_ref, snr_ref, w1a_ref, w1b_ref, b1_ref,
                     w2_ref, b2_ref, out_ref, *, inv_hw):
    x = x_ref[...]                                   # (N, C, H*W) f32

    # squeeze: spatial mean per (batch, channel) — lane-axis reduction (XLU)
    mu = jnp.sum(x, axis=2) * inv_hw                 # (N, C)

    # fc1 on [mu, snr] (concat realized as a split matmul) + ReLU
    h = jnp.dot(mu, w1a_ref[...], preferred_element_type=jnp.float32)
    h = h + snr_ref[...] * w1b_ref[...] + b1_ref[...]
    h = jnp.maximum(h, 0.0)                          # (N, Nh)

    # fc2 + sigmoid
    g = jnp.dot(h, w2_ref[...], preferred_element_type=jnp.float32) + b2_ref[...]
    g = 1.0 / (1.0 + jnp.exp(-g))                    # (N, No); exp on EUP

    # excite: per-channel gate broadcast over the lane (spatial) axis
    out_ref[...] = x * g[:, :, None]


# ----------------------------------------------------------------------------
# Wrapper: takes PyTorch-convention tensors (NCHW x, (N,)/(N,1) snr,
#          torch nn.Linear weights of shape (out_features, in_features))
# ----------------------------------------------------------------------------
def af_block_forward(x_nchw, snr, params):
    N, C, H, W = x_nchw.shape
    Nh = params["w1"].shape[0]
    No = params["w2"].shape[0]
    assert params["w1"].shape[1] == C + 1, "fc1 expects Nin + 1 features"
    assert No == C, "channel gate requires No == channels of x"
    HW = H * W

    # glue: lane-dense layout (N, C, H*W); contiguous reshape, no data movement
    x3 = x_nchw.reshape(N, C, HW).astype(jnp.float32)
    snr2 = jnp.asarray(snr, jnp.float32).reshape(N, 1)

    # glue: split fc1 weight so the kernel needs no feature-dim concat
    w1 = params["w1"]                               # (Nh, C+1), torch layout
    w1a = jnp.transpose(w1[:, :C])                  # (C, Nh)
    w1b = w1[:, C].reshape(1, Nh)                   # (1, Nh) snr column
    b1 = params["b1"].reshape(1, Nh)
    w2 = jnp.transpose(params["w2"])                # (Nh, No)
    b2 = params["b2"].reshape(1, No)

    kernel = functools.partial(_af_block_kernel, inv_hw=float(1.0 / HW))

    out3 = pl.pallas_call(
        kernel,
        out_shape=jax.ShapeDtypeStruct((N, C, HW), jnp.float32),
        grid=(1,),   # whole (small) batch in one step; tile batch here if N grows
        in_specs=[
            pl.BlockSpec((N, C, HW), lambda b: (0, 0, 0)),
            pl.BlockSpec((N, 1), lambda b: (0, 0)),
            pl.BlockSpec((C, Nh), lambda b: (0, 0)),
            pl.BlockSpec((1, Nh), lambda b: (0, 0)),
            pl.BlockSpec((1, Nh), lambda b: (0, 0)),
            pl.BlockSpec((Nh, No), lambda b: (0, 0)),
            pl.BlockSpec((1, No), lambda b: (0, 0)),
        ],
        out_specs=pl.BlockSpec((N, C, HW), lambda b: (0, 0, 0)),
        compiler_params=pltpu.CompilerParams(
            dimension_semantics=("arbitrary",)),
    )(x3, snr2, w1a, w1b, b1, w2, b2)

    # glue: back to NCHW (free contiguous reshape)
    return out3.reshape(N, C, H, W)


# ----------------------------------------------------------------------------
# Pure-JAX reference mirroring the PyTorch forward
# ----------------------------------------------------------------------------
def reference_forward(x, snr, params):
    N = x.shape[0]
    snr2 = jnp.asarray(snr, jnp.float32).reshape(N, 1)
    mu = jnp.mean(x, axis=(2, 3))
    out = jnp.concatenate([mu, snr2], axis=1)
    out = out @ params["w1"].T + params["b1"]
    out = jnp.maximum(out, 0.0)
    out = out @ params["w2"].T + params["b2"]
    out = jax.nn.sigmoid(out)
    return out[:, :, None, None] * x


# ----------------------------------------------------------------------------
# Deterministic parameter construction (matching module shapes)
# ----------------------------------------------------------------------------
def make_params(key, Nin, Nh, No):
    ks = jax.random.split(key, 4)
    return {
        "w1": 0.2 * jax.random.normal(ks[0], (Nh, Nin + 1), jnp.float32),
        "b1": 0.1 * jax.random.normal(ks[1], (Nh,), jnp.float32),
        "w2": 0.2 * jax.random.normal(ks[2], (No, Nh), jnp.float32),
        "b2": 0.1 * jax.random.normal(ks[3], (No,), jnp.float32),
    }


if __name__ == "__main__":
    key = jax.random.PRNGKey(0)
    N, C, H, W, Nh = 2, 4, 16, 16, 32
    kx, ks, kp = jax.random.split(key, 3)

    x = jax.random.normal(kx, (N, C, H, W), jnp.float32)
    snr = jax.random.uniform(ks, (N, 1), jnp.float32, 0.0, 20.0)
    params = make_params(kp, C, Nh, C)

    out = jax.block_until_ready(af_block_forward(x, snr, params))
    ref = reference_forward(x, snr, params)
    np.testing.assert_allclose(np.asarray(out), np.asarray(ref),
                               rtol=1e-4, atol=1e-4)

    print("KERNEL_OK")
</pallas_src>

<mosaic_0001>
module attributes {stable_mosaic.version = 11 : i64} {
  func.func @_af_block_kernel(%arg0: i32, %arg1: memref<2x4x256xf32, #tpu.memory_space<vmem>>, %arg2: memref<2x1xf32, #tpu.memory_space<vmem>>, %arg3: memref<4x32xf32, #tpu.memory_space<vmem>>, %arg4: memref<1x32xf32, #tpu.memory_space<vmem>>, %arg5: memref<1x32xf32, #tpu.memory_space<vmem>>, %arg6: memref<32x4xf32, #tpu.memory_space<vmem>>, %arg7: memref<1x4xf32, #tpu.memory_space<vmem>>, %arg8: memref<2x4x256xf32, #tpu.memory_space<vmem>>) attributes {dimension_semantics = [#tpu.dimension_semantics<arbitrary>], iteration_bounds = array<i64: 1>, scalar_prefetch = 0 : i64, scratch_operands = 0 : i64, tpu.core_type = #tpu.core_type<tc>, window_params = [{pipeline_mode = #tpu.pipeline_mode<synchronous>, transform_indices = @transform_0, window_bounds = array<i64: 2, 4, 256>}, {pipeline_mode = #tpu.pipeline_mode<synchronous>, transform_indices = @transform_1, window_bounds = array<i64: 2, 1>}, {pipeline_mode = #tpu.pipeline_mode<synchronous>, transform_indices = @transform_2, window_bounds = array<i64: 4, 32>}, {pipeline_mode = #tpu.pipeline_mode<synchronous>, transform_indices = @transform_3, window_bounds = array<i64: 1, 32>}, {pipeline_mode = #tpu.pipeline_mode<synchronous>, transform_indices = @transform_4, window_bounds = array<i64: 1, 32>}, {pipeline_mode = #tpu.pipeline_mode<synchronous>, transform_indices = @transform_5, window_bounds = array<i64: 32, 4>}, {pipeline_mode = #tpu.pipeline_mode<synchronous>, transform_indices = @transform_6, window_bounds = array<i64: 1, 4>}, {pipeline_mode = #tpu.pipeline_mode<synchronous>, transform_indices = @transform_7, window_bounds = array<i64: 2, 4, 256>}]} {
    %c0 = arith.constant 0 : index
    %c0_0 = arith.constant 0 : index
    %c0_1 = arith.constant 0 : index
    %0 = vector.load %arg1[%c0, %c0_0, %c0_1] : memref<2x4x256xf32, #tpu.memory_space<vmem>>, vector<2x4x256xf32>
    %cst = arith.constant dense<0.000000e+00> : vector<2x4xf32>
    %1 = vector.multi_reduction <add>, %0, %cst [2] : vector<2x4x256xf32> to vector<2x4xf32>
    %cst_2 = arith.constant 3.906250e-03 : f32
    %2 = vector.broadcast %cst_2 : f32 to vector<2x4xf32>
    %3 = arith.mulf %1, %2 : vector<2x4xf32>
    %c0_3 = arith.constant 0 : index
    %c0_4 = arith.constant 0 : index
    %4 = vector.load %arg3[%c0_3, %c0_4] : memref<4x32xf32, #tpu.memory_space<vmem>>, vector<4x32xf32>
    %cst_5 = arith.constant dense<0.000000e+00> : vector<2x32xf32>
    %5 = tpu.matmul %3, %4, %cst_5 {dimension_numbers = #tpu.dot_dimension_numbers<[1], [0], [0], [1], [0, 0, 1, 1], [], []>} : vector<2x4xf32>, vector<4x32xf32>, vector<2x32xf32> -> vector<2x32xf32>
    %c0_6 = arith.constant 0 : index
    %c0_7 = arith.constant 0 : index
    %6 = vector.load %arg2[%c0_6, %c0_7] : memref<2x1xf32, #tpu.memory_space<vmem>>, vector<2x1xf32>
    %c0_8 = arith.constant 0 : index
    %c0_9 = arith.constant 0 : index
    %7 = vector.load %arg4[%c0_8, %c0_9] : memref<1x32xf32, #tpu.memory_space<vmem>>, vector<1x32xf32>
    %8 = vector.broadcast %6 : vector<2x1xf32> to vector<2x32xf32>
    %9 = vector.broadcast %7 : vector<1x32xf32> to vector<2x32xf32>
    %10 = arith.mulf %8, %9 : vector<2x32xf32>
    %11 = arith.addf %5, %10 : vector<2x32xf32>
    %c0_10 = arith.constant 0 : index
    %c0_11 = arith.constant 0 : index
    %12 = vector.load %arg5[%c0_10, %c0_11] : memref<1x32xf32, #tpu.memory_space<vmem>>, vector<1x32xf32>
    %13 = vector.broadcast %12 : vector<1x32xf32> to vector<2x32xf32>
    %14 = arith.addf %11, %13 : vector<2x32xf32>
    %cst_12 = arith.constant 0.000000e+00 : f32
    %15 = vector.broadcast %cst_12 : f32 to vector<2x32xf32>
    %16 = arith.maximumf %14, %15 : vector<2x32xf32>
    %c0_13 = arith.constant 0 : index
    %c0_14 = arith.constant 0 : index
    %17 = vector.load %arg6[%c0_13, %c0_14] : memref<32x4xf32, #tpu.memory_space<vmem>>, vector<32x4xf32>
    %cst_15 = arith.constant dense<0.000000e+00> : vector<2x4xf32>
    %18 = tpu.matmul %16, %17, %cst_15 {dimension_numbers = #tpu.dot_dimension_numbers<[1], [0], [0], [1], [0, 0, 1, 1], [], []>} : vector<2x32xf32>, vector<32x4xf32>, vector<2x4xf32> -> vector<2x4xf32>
    %c0_16 = arith.constant 0 : index
    %c0_17 = arith.constant 0 : index
    %19 = vector.load %arg7[%c0_16, %c0_17] : memref<1x4xf32, #tpu.memory_space<vmem>>, vector<1x4xf32>
    %20 = vector.broadcast %19 : vector<1x4xf32> to vector<2x4xf32>
    %21 = arith.addf %18, %20 : vector<2x4xf32>
    %cst_18 = arith.constant 0.000000e+00 : f32
    %22 = vector.broadcast %cst_18 : f32 to vector<2x4xf32>
    %23 = arith.subf %22, %21 : vector<2x4xf32>
    %24 = math.exp %23 : vector<2x4xf32>
    %cst_19 = arith.constant 1.000000e+00 : f32
    %25 = vector.broadcast %cst_19 : f32 to vector<2x4xf32>
    %26 = arith.addf %25, %24 : vector<2x4xf32>
    %cst_20 = arith.constant 1.000000e+00 : f32
    %27 = vector.broadcast %cst_20 : f32 to vector<2x4xf32>
    %28 = arith.divf %27, %26 : vector<2x4xf32>
    %29 = vector.shape_cast %28 : vector<2x4xf32> to vector<2x4x1xf32>
    %30 = vector.broadcast %29 : vector<2x4x1xf32> to vector<2x4x256xf32>
    %31 = arith.mulf %0, %30 : vector<2x4x256xf32>
    %c0_21 = arith.constant 0 : index
    %c0_22 = arith.constant 0 : index
    %c0_23 = arith.constant 0 : index
    %32 = vector.load %arg8[%c0_21, %c0_22, %c0_23] : memref<2x4x256xf32, #tpu.memory_space<vmem>>, vector<2x4x256xf32>
    tpu.vector_store %arg8[%c0_21, %c0_22, %c0_23], %31 {strides = array<i32>} : memref<2x4x256xf32, #tpu.memory_space<vmem>>, vector<2x4x256xf32>,
    return
  }
  func.func @transform_0(%arg0: i32) -> (i32, i32, i32) {
    %c0_i32 = arith.constant 0 : i32
    %c0_i32_0 = arith.constant 0 : i32
    %c0_i32_1 = arith.constant 0 : i32
    %c0_i32_2 = arith.constant 0 : i32
    return %c0_i32, %c0_i32_0, %c0_i32_1 : i32, i32, i32
  }
  func.func @transform_1(%arg0: i32) -> (i32, i32) {
    %c0_i32 = arith.constant 0 : i32
    %c0_i32_0 = arith.constant 0 : i32
    %c0_i32_1 = arith.constant 0 : i32
    return %c0_i32, %c0_i32_0 : i32, i32
  }
  func.func @transform_2(%arg0: i32) -> (i32, i32) {
    %c0_i32 = arith.constant 0 : i32
    %c0_i32_0 = arith.constant 0 : i32
    %c0_i32_1 = arith.constant 0 : i32
    return %c0_i32, %c0_i32_0 : i32, i32
  }
  func.func @transform_3(%arg0: i32) -> (i32, i32) {
    %c0_i32 = arith.constant 0 : i32
    %c0_i32_0 = arith.constant 0 : i32
    %c0_i32_1 = arith.constant 0 : i32
    return %c0_i32, %c0_i32_0 : i32, i32
  }
  func.func @transform_4(%arg0: i32) -> (i32, i32) {
    %c0_i32 = arith.constant 0 : i32
    %c0_i32_0 = arith.constant 0 : i32
    %c0_i32_1 = arith.constant 0 : i32
    return %c0_i32, %c0_i32_0 : i32, i32
  }
  func.func @transform_5(%arg0: i32) -> (i32, i32) {
    %c0_i32 = arith.constant 0 : i32
    %c0_i32_0 = arith.constant 0 : i32
    %c0_i32_1 = arith.constant 0 : i32
    return %c0_i32, %c0_i32_0 : i32, i32
  }
  func.func @transform_6(%arg0: i32) -> (i32, i32) {
    %c0_i32 = arith.constant 0 : i32
    %c0_i32_0 = arith.constant 0 : i32
    %c0_i32_1 = arith.constant 0 : i32
    return %c0_i32, %c0_i32_0 : i32, i32
  }
  func.func @transform_7(%arg0: i32) -> (i32, i32, i32) {
    %c0_i32 = arith.constant 0 : i32
    %c0_i32_0 = arith.constant 0 : i32
    %c0_i32_1 = arith.constant 0 : i32
    %c0_i32_2 = arith.constant 0 : i32
    return %c0_i32, %c0_i32_0, %c0_i32_1 : i32, i32, i32
  }
}

</mosaic_0001>

<llo_original>
// kernel: tpu_custom_call.1
$region0: #{tpu_custom_call.1}
  #allocation0 [shape = 'u32[]', space=smem, size = 0x4, offset = 0x4, fixed_abs, tag = 'smem constant byte address 0x4 - core index']
  #allocation1 [shape = 'u32[144,128]{1,0:T(1,128)}', space=vmem, size = 0x12000, scoped, tag = 'internal scratch']
  %s0 = inlined_call_operand.vmem [shape: f32[2,4,256], index: 0, kind: input, shape index: {}]
  %s1 = inlined_call_operand.vmem [shape: f32[2,1], index: 1, kind: input, shape index: {}]
  %s2 = inlined_call_operand.vmem [shape: f32[4,32], index: 2, kind: input, shape index: {}]
  %s3 = inlined_call_operand.vmem [shape: f32[1,32], index: 3, kind: input, shape index: {}]
  %s4 = inlined_call_operand.vmem [shape: f32[1,32], index: 4, kind: input, shape index: {}]
  %s5 = inlined_call_operand.vmem [shape: f32[32,4], index: 5, kind: input, shape index: {}]
  %s6 = inlined_call_operand.vmem [shape: f32[1,4], index: 6, kind: input, shape index: {}]
  %s7 = inlined_call_operand.hbm [shape: f32[2,4,256], index: 7, kind: output, shape index: {}]
  %s8 = sld [smem:[#allocation0]]
  $region38: #{tpu_custom_call.1} parent=0
    _
  %s10 = ssub.s32 1, %s8
  %s11 = scalar_select 0, %s10, %s8
  $region1: #{tpu_custom_call.1} parent=0
    #allocation2 [shape = 'u8[8192]{0}', space=vmem, size = 0x2000, scoped, tag = 'output window, operand 0, single buffered']
    #allocation3 [shape = 's32[1]{0}', space=sflag, size = 0x4, scoped, tag = 'scoped memory for tpu_custom_call.1']
    %12 = vsyncpa [#allocation3], 0
    // Predicated region
    $region2: #{tpu_custom_call.1} parent=1 // pred_check
      _
    $region3: #{tpu_custom_call.1} parent=1 // pred_check_branch
      %14 = sbr.rel (0) target = $region5
    $region4: #{tpu_custom_call.1} parent=1 // pred_region
      _
    $region5: #{tpu_custom_call.1} parent=1 // pred_fallthru
      _
    // Predicated region
    $region6: #{tpu_custom_call.1} parent=1 // pred_check
      _
    $region7: #{tpu_custom_call.1} parent=1 // pred_check_branch
      %16 = sbr.rel (0) target = $region9
    $region8: #{tpu_custom_call.1} parent=1 // pred_region
      _
    $region9: #{tpu_custom_call.1} parent=1 // pred_fallthru
      _
    // Predicated region
    $region10: #{tpu_custom_call.1} parent=1 // pred_check
      _
    $region11: #{tpu_custom_call.1} parent=1 // pred_check_branch
      %18 = sbr.rel (0) target = $region13
    $region12: #{tpu_custom_call.1} parent=1 // pred_region
      _
    $region13: #{tpu_custom_call.1} parent=1 // pred_fallthru
      _
    // Predicated region
    $region14: #{tpu_custom_call.1} parent=1 // pred_check
      _
    $region15: #{tpu_custom_call.1} parent=1 // pred_check_branch
      %20 = sbr.rel (0) target = $region17
    $region16: #{tpu_custom_call.1} parent=1 // pred_region
      _
    $region17: #{tpu_custom_call.1} parent=1 // pred_fallthru
      _
    // Predicated region
    $region18: #{tpu_custom_call.1} parent=1 // pred_check
      _
    $region19: #{tpu_custom_call.1} parent=1 // pred_check_branch
      %22 = sbr.rel (0) target = $region21
    $region20: #{tpu_custom_call.1} parent=1 // pred_region
      _
    $region21: #{tpu_custom_call.1} parent=1 // pred_fallthru
      _
    // Predicated region
    $region22: #{tpu_custom_call.1} parent=1 // pred_check
      _
    $region23: #{tpu_custom_call.1} parent=1 // pred_check_branch
      %24 = sbr.rel (0) target = $region25
    $region24: #{tpu_custom_call.1} parent=1 // pred_region
      _
    $region25: #{tpu_custom_call.1} parent=1 // pred_fallthru
      _
    // Predicated region
    $region26: #{tpu_custom_call.1} parent=1 // pred_check
      _
    $region27: #{tpu_custom_call.1} parent=1 // pred_check_branch
      %26 = sbr.rel (0) target = $region29
    $region28: #{tpu_custom_call.1} parent=1 // pred_region
      _
    $region29: #{tpu_custom_call.1} parent=1 // pred_fallthru
      _
    %v27 = vld [vmem:[%s0] sm:$0xff]
    %v28 = vld [vmem:[%s0 + $0x8] sm:$0xff]
    %v31 = vcombine.high %v27, %v27
    %v32 = vcombine.high %v28, %v28
    %vm35 = vcmask 1043456
    %v36 = vsel %vm35, %v27, 0.0
    %v37 = vsel %vm35, %v31, 0.0
    %v38 = vadd.f32 %v36, %v37
    %39 = vadd.xlane.f32.xlu0 %v38
    %v40 = vpop.xlane.xlu0 %39
    %v41 = vsel %vm35, %v28, 0.0
    %v42 = vsel %vm35, %v32, 0.0
    %v43 = vadd.f32 %v41, %v42
    %44 = vadd.xlane.f32.xlu0 %v43
    %v45 = vpop.xlane.xlu0 %44
    %v46 = vmul.f32 %v40, 0.00390625
    %v47 = vmul.f32 %v45, 0.00390625
    %v48 = vld [vmem:[%s2] sm:$0xf]
    %v49 = vld [vmem:[%s1] sm:$0x3]
    %v50 = vld [vmem:[%s3] sm:$0x1]
    %52 = vset.pattern.permute.xlu0 0
    %53 = vperm.xlu0 %52, %v49
    %v54 = vpop.permute.xlu0 %53
    %v57 = vlaneseq
    %v58 = vshrl.u32 %v57, 7
    %v59 = vsub.s32 0, %v58
    %v60 = vrot.slane %v50, %v59
    %v62 = vmul.f32 %v54, %v60
    %v65 = vlaneseq
    %v66 = vand.u32 %v65, 127
    %v67 = vlaneseq
    %v68 = vshrl.u32 %v67, 7
    %v69 = vsub.s32 %v66, %v68
    %v70 = vrot.slane %v46, %v69
    %v71 = vlaneseq
    %v72 = vshrl.u32 %v71, 7
    %v73 = vsub.s32 %v66, %v72
    %v74 = vrot.slane %v47, %v73
    %vm75 = vcmask 1041409
    %v76 = vsel %vm75, %v74, %v70
    %vm77 = vcmask 31744
    %v78 = vsel %vm77, %v76, 0
    %v81 = vsel %vm35, %v48, 0
    %83 = vmatprep.subr.mxu0 0.0
    %84 = vmatpush1.msra.mxu0 %v81
    %85 = vmatprep.subr.mxu0 0.0
    %86 = vmatpush1.msra.mxu0 0.0
    %87 = vmatprep.subr.mxu0 0.0
    %88 = vmatpush1.msra.mxu0 0.0
    %89 = vmatprep.subr.mxu0 0.0
    %90 = vmatpush1.msra.mxu0 0.0
    %91 = vmatprep.subr.mxu0 0.0
    %92 = vmatpush1.msra.mxu0 0.0
    %93 = vmatprep.subr.mxu0 0.0
    %94 = vmatpush1.msra.mxu0 0.0
    %95 = vmatprep.subr.mxu0 0.0
    %96 = vmatpush1.msra.mxu0 0.0
    %97 = vmatprep.subr.mxu0 0.0
    %98 = vmatpush1.msra.mxu0 0.0
    %99 = vmatprep.subr.mxu0 0.0
    %100 = vmatpush1.msra.mxu0 0.0
    %101 = vmatprep.subr.mxu0 0.0
    %102 = vmatpush1.msra.mxu0 0.0
    %103 = vmatprep.subr.mxu0 0.0
    %104 = vmatpush1.msra.mxu0 0.0
    %105 = vmatprep.subr.mxu0 0.0
    %106 = vmatpush1.msra.mxu0 0.0
    %107 = vmatprep.subr.mxu0 0.0
    %108 = vmatpush1.msra.mxu0 0.0
    %109 = vmatprep.subr.mxu0 0.0
    %110 = vmatpush1.msra.mxu0 0.0
    %111 = vmatprep.subr.mxu0 0.0
    %112 = vmatpush1.msra.mxu0 0.0
    %113 = vmatprep.subr.mxu0 0.0
    %114 = vmatpush1.msra.mxu0 0.0
    %115 = vmatprep.subr.mxu0 0.0
    %116 = vmatpush1.msra.mxu0 0.0
    %117 = vmatprep.subr.mxu0 0.0
    %118 = vmatpush1.msra.mxu0 0.0
    %119 = vmatprep.subr.mxu0 0.0
    %120 = vmatpush1.msra.mxu0 0.0
    %121 = vmatprep.subr.mxu0 0.0
    %122 = vmatpush1.msra.mxu0 0.0
    %123 = vmatprep.subr.mxu0 0.0
    %124 = vmatpush1.msra.mxu0 0.0
    %125 = vmatprep.subr.mxu0 0.0
    %126 = vmatpush1.msra.mxu0 0.0
    %127 = vmatprep.subr.mxu0 0.0
    %128 = vmatpush1.msra.mxu0 0.0
    %129 = vmatprep.subr.mxu0 0.0
    %130 = vmatpush1.msra.mxu0 0.0
    %131 = vmatprep.subr.mxu0 0.0
    %132 = vmatpush1.msra.mxu0 0.0
    %133 = vmatprep.subr.mxu0 0.0
    %134 = vmatpush1.msra.mxu0 0.0
    %135 = vmatprep.subr.mxu0 0.0
    %136 = vmatpush1.msra.mxu0 0.0
    %137 = vmatprep.subr.mxu0 0.0
    %138 = vmatpush1.msra.mxu0 0.0
    %139 = vmatprep.subr.mxu0 0.0
    %140 = vmatpush1.msra.mxu0 0.0
    %141 = vmatprep.subr.mxu0 0.0
    %142 = vmatpush1.msra.mxu0 0.0
    %143 = vmatprep.subr.mxu0 0.0
    %144 = vmatpush1.msra.mxu0 0.0
    %145 = vmatprep.subr.mxu0 0.0
    %146 = vmatpush1.msra.mxu0 0.0
    %147 = vmatprep.mubr.f32.mxu0 0.0
    %148 = vmatmul.mubr.f32.gmra.mrb[0].mxu0 %v78
    %v149 = vpop.f32.mrb[0].mxu0
    %v150 = vadd.f32 %v62, %v149
    %v151 = vpop.f32.mrb[0].mxu0
    %152 = vdwg.mxu0
    %v153 = vld [vmem:[%s4] sm:$0x1]
    %v155 = vlaneseq
    %v156 = vshrl.u32 %v155, 7
    %v157 = vsub.s32 0, %v156
    %v158 = vrot.slane %v153, %v157
    %v160 = vadd.f32 %v150, %v158
    %v161 = vmax.f32 %v160, 0.0
    %v162 = vld [vmem:[%s5] sm:$0xff]
    %v163 = vld [vmem:[%s5 + $0x8] sm:$0xff]
    %v164 = vld [vmem:[%s5 + $0x10] sm:$0xff]
    %v165 = vld [vmem:[%s5 + $0x18] sm:$0xff]
    %v166 = vld [vmem:[%s6] sm:$0x1]
    %v168 = vlaneseq
    %v169 = vshrl.u32 %v168, 7
    %v170 = vsub.s32 0, %v169
    %v171 = vrot.slane %v166, %v170
    %vm173 = vcmask 261120
    %v175 = vsel %vm173, %v161, 0
    %177 = vmatprep.subr.mxu0 0.0
    %178 = vmatpush1.msra.mxu0 %v162
    %179 = vmatprep.subr.mxu0 0.0
    %180 = vmatpush1.msra.mxu0 %v163
    %181 = vmatprep.subr.mxu0 0.0
    %182 = vmatpush1.msra.mxu0 %v164
    %183 = vmatprep.subr.mxu0 0.0
    %184 = vmatpush1.msra.mxu0 %v165
    %185 = vmatprep.subr.mxu0 0.0
    %186 = vmatpush1.msra.mxu0 0.0
    %187 = vmatprep.subr.mxu0 0.0
    %188 = vmatpush1.msra.mxu0 0.0
    %189 = vmatprep.subr.mxu0 0.0
    %190 = vmatpush1.msra.mxu0 0.0
    %191 = vmatprep.subr.mxu0 0.0
    %192 = vmatpush1.msra.mxu0 0.0
    %193 = vmatprep.subr.mxu0 0.0
    %194 = vmatpush1.msra.mxu0 0.0
    %195 = vmatprep.subr.mxu0 0.0
    %196 = vmatpush1.msra.mxu0 0.0
    %197 = vmatprep.subr.mxu0 0.0
    %198 = vmatpush1.msra.mxu0 0.0
    %199 = vmatprep.subr.mxu0 0.0
    %200 = vmatpush1.msra.mxu0 0.0
    %201 = vmatprep.subr.mxu0 0.0
    %202 = vmatpush1.msra.mxu0 0.0
    %203 = vmatprep.subr.mxu0 0.0
    %204 = vmatpush1.msra.mxu0 0.0
    %205 = vmatprep.subr.mxu0 0.0
    %206 = vmatpush1.msra.mxu0 0.0
    %207 = vmatprep.subr.mxu0 0.0
    %208 = vmatpush1.msra.mxu0 0.0
    %209 = vmatprep.subr.mxu0 0.0
    %210 = vmatpush1.msra.mxu0 0.0
    %211 = vmatprep.subr.mxu0 0.0
    %212 = vmatpush1.msra.mxu0 0.0
    %213 = vmatprep.subr.mxu0 0.0
    %214 = vmatpush1.msra.mxu0 0.0
    %215 = vmatprep.subr.mxu0 0.0
    %216 = vmatpush1.msra.mxu0 0.0
    %217 = vmatprep.subr.mxu0 0.0
    %218 = vmatpush1.msra.mxu0 0.0
    %219 = vmatprep.subr.mxu0 0.0
    %220 = vmatpush1.msra.mxu0 0.0
    %221 = vmatprep.subr.mxu0 0.0
    %222 = vmatpush1.msra.mxu0 0.0
    %223 = vmatprep.subr.mxu0 0.0
    %224 = vmatpush1.msra.mxu0 0.0
    %225 = vmatprep.subr.mxu0 0.0
    %226 = vmatpush1.msra.mxu0 0.0
    %227 = vmatprep.subr.mxu0 0.0
    %228 = vmatpush1.msra.mxu0 0.0
    %229 = vmatprep.subr.mxu0 0.0
    %230 = vmatpush1.msra.mxu0 0.0
    %231 = vmatprep.subr.mxu0 0.0
    %232 = vmatpush1.msra.mxu0 0.0
    %233 = vmatprep.subr.mxu0 0.0
    %234 = vmatpush1.msra.mxu0 0.0
    %235 = vmatprep.subr.mxu0 0.0
    %236 = vmatpush1.msra.mxu0 0.0
    %237 = vmatprep.subr.mxu0 0.0
    %238 = vmatpush1.msra.mxu0 0.0
    %239 = vmatprep.subr.mxu0 0.0
    %240 = vmatpush1.msra.mxu0 0.0
    %241 = vmatprep.mubr.f32.mxu0 0.0
    %242 = vmatmul.mubr.f32.gmra.mrb[0].mxu0 %v175
    %v243 = vpop.f32.mrb[0].mxu0
    %v244 = vadd.f32 %v171, %v243
    %v245 = vpop.f32.mrb[0].mxu0
    %246 = vdwg.mxu0
    %v247 = vsub.f32 0.0, %v244
    %v248 = vmul.f32 %v247, 1.442695
    %v249 = vpow.pop %v248
    %v250 = vadd.f32 %v249, 1.0
    %v251 = vrcp.pop %v250
    %v252 = vmul.f32 1.0, %v251
    %v253 = vlaneseq
    %v254 = vshrl.u32 %v253, 7
    %v255 = vsub.s32 0, %v254
    %v256 = vrot.slane %v252, %v255
    %258 = vbcast.lane.b32.xlu0 %v256, 256
    %v259 = vpop.permute.xlu0 %258
    %v260 = vlaneseq
    %v261 = vshrl.u32 %v260, 7
    %v262 = vsub.s32 1, %v261
    %v263 = vrot.slane %v252, %v262
    %265 = vbcast.lane.b32.xlu0 %v263, 256
    %v266 = vpop.permute.xlu0 %265
    %v270 = vunpack.c.l.s4 839922192
    %v271 = vunpack.c.0.s8 %v270
    %v272 = vlaneseq
    %v273 = vshrl.u32 %v272, 7
    %v274 = vsub.s32 %v271, %v273
    %v275 = vrot.slane %v259, %v274
    %v277 = vunpack.c.l.s4 839922192
    %v278 = vunpack.c.0.s8 %v277
    %v279 = vlaneseq
    %v280 = vshrl.u32 %v279, 7
    %v281 = vsub.s32 %v278, %v280
    %v282 = vrot.slane %v266, %v281
    %v285 = vmul.f32 %v27, %v275
    %v286 = vmul.f32 %v28, %v282
    %287 = vst [vmem:[#allocation2] sm:$0xff] %v285
    %288 = vst [vmem:[#allocation2 + $0x8] sm:$0xff] %v286
    // Predicated region
    $region30: #{tpu_custom_call.1} parent=1 // pred_check
      _
    $region31: #{tpu_custom_call.1} parent=1 // pred_check_branch
      %290 = sbr.rel (0) target = $region33
    $region32: #{tpu_custom_call.1} parent=1 // pred_region
      %s292 = ssub.s32 256, 256
      %293 = vsyncadd [#allocation3], %s292
      %s294 = sshll.u32 [#allocation2], 4
      %s295 = int_to_ptr.vmem [resolvable:$true] %s294
      %300 = dma.vmem_to_hbm [thread:$0]  %s295, 256, %s7, [#allocation3], 128, 128, 8
    $region33: #{tpu_custom_call.1} parent=1 // pred_fallthru
      _
    // Predicated region
    $region34: #{tpu_custom_call.1} parent=1 // pred_check
      _
    $region35: #{tpu_custom_call.1} parent=1 // pred_check_branch
      %302 = sbr.rel (0) target = $region37
    $region36: #{tpu_custom_call.1} parent=1 // pred_region
      %303 = dma.done [#allocation3], 256
    $region37: #{tpu_custom_call.1} parent=1 // pred_fallthru
      _
    %304 = vsyncpa [#allocation3], 1

</llo_original>
